<compile_context>
chip_gen: v6e
topology: v6e:2x2x1
jax: 0.10.0
libtpu: 0.0.40
codegen_flags: <defaults>
</compile_context>

<pallas_src>
import functools

import jax
import jax.numpy as jnp
import numpy as np
from jax.experimental import pallas as pl
from jax.experimental.pallas import tpu as pltpu

# ----------------------------- config (GraphConfig) --------------------------
HIDDEN = 32            # config.hidden_dim (small for test; production = 256)
H4 = HIDDEN // 4       # 8
H8 = HIDDEN // 8       # 4
MAX_HOP = 3            # config.max_hop_distance
USE_TEMPORAL = True
TOTAL_DIM = H4 * 3 + H8 + (H8 if USE_TEMPORAL else 0)   # == HIDDEN here

FEATURE_DIM = 16
NUM_NODE_TYPES = 5
N_NODES = 16
N_EDGES = 40

ZW = H4 + 1            # z width: H4 struct columns + trailing degree (ones) column.
                       # The ones column is LAST so the struct slice is a
                       # lane-aligned prefix (no cross-lane shift in the epilogue).

_HIGH = jax.lax.Precision.HIGHEST


def _round_up(a, b):
    return (a + b - 1) // b * b


# ----------------------------- Pallas kernel ---------------------------------
def tokenizer_kernel(x_ref, adj_ref, z_ref, static_ref,
                     wff_ref, bs_ref, wfs_ref, out_ref, nb_ref):
    f32 = jnp.float32
    k = pl.program_id(1)

    @pl.when(k == 0)
    def _():
        nb_ref[...] = jnp.zeros_like(nb_ref)

    # K-tiled adjacency contraction (the only large stream): nb[:, :H4] accumulates
    # (A @ feat) @ ws and nb[:, H4] accumulates the row degree (ones column of z).
    nb_ref[...] += jnp.dot(adj_ref[...], z_ref[...], preferred_element_type=f32)

    @pl.when(k == pl.num_programs(1) - 1)
    def _():
        nb = nb_ref[...]                                            # [tn, ZW] f32
        deg = nb[:, H4:H4 + 1]                                      # row degree
        inv_deg = pl.reciprocal(jnp.maximum(deg, 1.0), approx=True)  # EUP slot
        # (sum_neighbors feat @ ws) / deg == (neighbor_mean @ ws); then bias + ReLU.
        struct = jnp.maximum(nb[:, :H4] * inv_deg + bs_ref[...], 0.0)   # f32 VPU

        # Branch A: direct feature contribution, feature_proj folded through wfin.
        acc = jnp.dot(x_ref[...], wff_ref[...], preferred_element_type=f32)
        # Branch B epilogue: structure contribution through its wfin slice.
        acc += jnp.dot(struct.astype(wfs_ref.dtype), wfs_ref[...],
                       preferred_element_type=f32)
        # Branches C/D + all biases are pre-folded into static_ref in the wrapper.
        out_ref[...] = acc + static_ref[...]


# ----------------------------- wrapper ---------------------------------------
def multi_element_tokenizer(params, x, node_types, hop_distances, edge_index,
                            timestamps):
    n, f = x.shape
    f32, bf16 = jnp.float32, jnp.bfloat16
    dot_h = functools.partial(jnp.dot, precision=_HIGH)

    # ---- fold constant parameters through the final projection (once, param-level)
    wfin, bfin = params["wfin"], params["bfin"]
    w_feat_fin = wfin[0:H4]
    w_type_fin = wfin[H4:2 * H4]
    w_struct_fin = wfin[2 * H4:3 * H4]
    w_hop_fin = wfin[3 * H4:3 * H4 + H8]
    w_time_fin = wfin[3 * H4 + H8:]

    wff_fold = dot_h(params["wf"], w_feat_fin)               # [F, HIDDEN]
    type_fold = dot_h(params["type_table"], w_type_fin)      # [T, HIDDEN]
    hop_fold = dot_h(params["hop_table"], w_hop_fin)         # [MAX_HOP+1, HIDDEN]
    wt_fold = dot_h(params["wt"], w_time_fin)                 # [1, HIDDEN]
    bias_total = (bfin + dot_h(params["bf"], w_feat_fin)
                  + dot_h(params["bt"], w_time_fin))           # [1, HIDDEN]

    # ---- precompute the adjacency contraction operand z = [feat @ ws | 1]
    # (structure_encoder's Linear folded through the feature projection; exact
    # algebraic reassociation).  The trailing ones column makes (adj @ z)[:, H4]
    # the node degree for free — no cross-lane row reduce in the kernel.
    x = x.astype(f32)
    wf_ws = dot_h(params["wf"], params["ws"])                  # [F, H4]
    bf_ws = dot_h(params["bf"], params["ws"])                  # [1, H4]
    z = jnp.concatenate([dot_h(x, wf_ws) + bf_ws, jnp.ones((n, 1), f32)], axis=1)

    # ---- per-node static contribution: type + hop gathers, the rank-1 temporal
    # branch and every bias folded through wfin (no one-hot matmuls, no [tn,1]
    # lane-width-1 input streams in the kernel).
    hop_clamped = jnp.clip(hop_distances, 0, MAX_HOP)
    ts = timestamps.reshape(n, 1).astype(f32)
    static_contrib = (type_fold[node_types] + hop_fold[hop_clamped]
                      + ts * wt_fold + bias_total)             # [N, HIDDEN]

    # ---- dense adjacency: A @ feat == index_add_(0, row, feat[col]).
    # TODO(synk): CSR + PrefetchScalarGridSpec gather DMA at production graph sizes.
    row, col = edge_index[0], edge_index[1]
    adj = jnp.zeros((n, n), f32).at[row, col].add(1.0)

    # ---- lane-dense output: pad HIDDEN up to a multiple of 128 lanes so output
    # stores are unmasked vst (no-op for production hidden_dim=256).
    h_pad = _round_up(HIDDEN, 128)
    if h_pad != HIDDEN:
        padc = ((0, 0), (0, h_pad - HIDDEN))
        wff_fold = jnp.pad(wff_fold, padc)
        w_struct_fin = jnp.pad(w_struct_fin, padc)
        static_contrib = jnp.pad(static_contrib, padc)

    # ---- tiling: row tiles tn ("parallel"), source/K tiles tk ("arbitrary").
    # Per-step VMEM ~ 2 * tn*tk*2B (adj, double-buffered) + tk*ZW*2B + small; this
    # fits v7x's 64 MiB VMEM; v5e/v6e (128 MiB) can roughly double tn/tk.
    if n <= 256:
        tn = tk = _round_up(n, 8)
        n_pad = tn
    else:
        tn = 256
        n_pad = _round_up(n, tn)
        tk = next(t for t in (2048, 1024, 512, 256) if n_pad % t == 0)

    if n_pad != n:
        pad = n_pad - n
        x = jnp.pad(x, ((0, pad), (0, 0)))
        adj = jnp.pad(adj, ((0, pad), (0, pad)))
        z = jnp.pad(z, ((0, pad), (0, 0)))
        static_contrib = jnp.pad(static_contrib, ((0, pad), (0, 0)))

    # ---- bf16 MXU operands (f32 accumulation in the kernel).  adj entries are
    # small integer edge multiplicities -> exact in bf16 (<= 256).
    adj = adj.astype(bf16)
    z = z.astype(bf16)
    x_b = x.astype(bf16)
    wff_b = wff_fold.astype(bf16)
    wfs_b = w_struct_fin.astype(bf16)
    bs = params["bs"].astype(f32)

    grid = (n_pad // tn, n_pad // tk)

    in_specs = [
        pl.BlockSpec((tn, f), lambda i, k: (i, 0)),        # x row tile (branch A)
        pl.BlockSpec((tn, tk), lambda i, k: (i, k)),       # adjacency tile
        pl.BlockSpec((tk, ZW), lambda i, k: (k, 0)),       # z K-tile
        pl.BlockSpec((tn, h_pad), lambda i, k: (i, 0)),    # folded static stream
        pl.BlockSpec(wff_b.shape, lambda i, k: (0, 0)),    # [F, h_pad]
        pl.BlockSpec(bs.shape, lambda i, k: (0, 0)),       # [1, H4]
        pl.BlockSpec(wfs_b.shape, lambda i, k: (0, 0)),    # [H4, h_pad]
    ]
    out_spec = pl.BlockSpec((tn, h_pad), lambda i, k: (i, 0))

    flops = (2 * n_pad * n_pad * ZW            # adjacency contraction
             + 2 * n_pad * f * h_pad           # direct feature branch
             + 2 * n_pad * H4 * h_pad)         # struct -> output projection
    bytes_accessed = (n_pad * n_pad * 2                        # adj (bf16), once
                      + (n_pad // tn) * n_pad * ZW * 2         # z per row block
                      + n_pad * f * 2                          # x
                      + n_pad * h_pad * 4                      # static_contrib
                      + n_pad * h_pad * 4                      # out
                      + wff_b.size * 2 + wfs_b.size * 2 + bs.size * 4)
    cost = pl.CostEstimate(flops=flops, transcendentals=n_pad,
                           bytes_accessed=bytes_accessed)

    out = pl.pallas_call(
        tokenizer_kernel,
        out_shape=jax.ShapeDtypeStruct((n_pad, h_pad), f32),
        grid=grid,
        in_specs=in_specs,
        out_specs=out_spec,
        scratch_shapes=[pltpu.VMEM((tn, ZW), f32)],            # nb accumulator
        compiler_params=pltpu.CompilerParams(
            dimension_semantics=("parallel", "arbitrary"),
            # safe on every generation incl. v7x's 64 MiB physical VMEM; raise
            # toward ~64 MiB on v5e/v6e when enlarging tn/tk.
            vmem_limit_bytes=32 * 1024 * 1024),
        cost_estimate=cost,
    )(x_b, adj, z, static_contrib, wff_b, bs, wfs_b)
    return out[:n, :HIDDEN]


# ----------------------------- reference (pure JAX, faithful to PyTorch) ------
def reference(params, x, node_types, hop_distances, edge_index, timestamps):
    feat = jnp.dot(x, params["wf"], precision=_HIGH) + params["bf"]
    type_emb = params["type_table"][node_types]
    hop_emb = params["hop_table"][jnp.clip(hop_distances, 0, MAX_HOP)]
    row, col = edge_index[0], edge_index[1]
    n = x.shape[0]
    neighbor_sum = jnp.zeros_like(feat).at[row].add(feat[col])
    deg = jnp.zeros((n,), jnp.float32).at[row].add(1.0)
    neighbor_mean = neighbor_sum / jnp.maximum(deg, 1.0)[:, None]
    struct = jnp.maximum(
        jnp.dot(neighbor_mean, params["ws"], precision=_HIGH) + params["bs"], 0.0)
    temp = jnp.dot(timestamps[:, None], params["wt"], precision=_HIGH) + params["bt"]
    combined = jnp.concatenate([feat, type_emb, struct, hop_emb, temp], axis=-1)
    return jnp.dot(combined, params["wfin"], precision=_HIGH) + params["bfin"]


# ----------------------------- deterministic init -----------------------------
def init_linear(key, fan_in, fan_out):
    k1, k2 = jax.random.split(key)
    bound = 1.0 / np.sqrt(fan_in)
    w = jax.random.uniform(k1, (fan_in, fan_out), jnp.float32, -bound, bound)
    b = jax.random.uniform(k2, (1, fan_out), jnp.float32, -bound, bound)
    return w, b


if __name__ == "__main__":
    root = jax.random.PRNGKey(0)
    keys = jax.random.split(root, 12)

    wf, bf = init_linear(keys[0], FEATURE_DIM, H4)            # feature_proj
    type_table = jax.random.normal(keys[1], (NUM_NODE_TYPES, H4), jnp.float32)
    hop_table = jax.random.normal(keys[2], (MAX_HOP + 1, H8), jnp.float32)
    ws, bs = init_linear(keys[3], H4, H4)                     # structure_encoder
    wt, bt = init_linear(keys[4], 1, H8)                      # temporal_proj
    wfin, bfin = init_linear(keys[5], TOTAL_DIM, HIDDEN)      # final_proj

    params = dict(wf=wf, bf=bf, type_table=type_table, hop_table=hop_table,
                  ws=ws, bs=bs, wt=wt, bt=bt, wfin=wfin, bfin=bfin)

    # inputs
    x = jax.random.normal(keys[6], (N_NODES, FEATURE_DIM), jnp.float32)
    node_types = jax.random.randint(keys[7], (N_NODES,), 0, NUM_NODE_TYPES)
    hop_distances = jax.random.randint(keys[8], (N_NODES,), -1, MAX_HOP + 3)  # clamp path
    edge_index = jax.random.randint(keys[9], (2, N_EDGES), 0, N_NODES)
    timestamps = jax.random.uniform(keys[10], (N_NODES,), jnp.float32)

    tokenizer = jax.jit(multi_element_tokenizer)
    out = tokenizer(params, x, node_types, hop_distances, edge_index, timestamps)
    out = jax.block_until_ready(out)

    ref = reference(params, x, node_types, hop_distances, edge_index, timestamps)
    # Tolerance covers bf16 MXU operands, folded-weight reassociation and the
    # approx EUP reciprocal (f32 accumulation everywhere).
    np.testing.assert_allclose(np.asarray(out), np.asarray(ref), rtol=2e-2, atol=2e-2)

    print("KERNEL_OK")
</pallas_src>

<mosaic_0001>
module attributes {stable_mosaic.version = 11 : i64} {
  func.func private @main(%arg0: i32) attributes {dimension_semantics = [#tpu.dimension_semantics<core_parallel>], iteration_bounds = array<i64: 2>, tpu.core_type = #tpu.core_type<sc_scalar_subcore>, window_params = []} {
    return
  }
}

module attributes {stable_mosaic.version = 11 : i64} {
  func.func private @main(%arg0: i32) attributes {dimension_semantics = [#tpu.dimension_semantics<core_parallel>], iteration_bounds = array<i64: 2>, tpu.core_type = #tpu.core_type<sc_scalar_subcore>, window_params = []} {
    return
  }
}

module attributes {stable_mosaic.version = 11 : i64} {
  func.func @tokenizer_kernel(%arg0: i32, %arg1: i32, %arg2: memref<16x16xbf16, #tpu.memory_space<vmem>>, %arg3: memref<16x16xbf16, #tpu.memory_space<vmem>>, %arg4: memref<16x9xbf16, #tpu.memory_space<vmem>>, %arg5: memref<16x128xf32, #tpu.memory_space<vmem>>, %arg6: memref<16x128xbf16, #tpu.memory_space<vmem>>, %arg7: memref<1x8xf32, #tpu.memory_space<vmem>>, %arg8: memref<8x128xbf16, #tpu.memory_space<vmem>>, %arg9: memref<16x128xf32, #tpu.memory_space<vmem>>, %arg10: memref<16x9xf32, #tpu.memory_space<vmem>>) attributes {dimension_semantics = [#tpu.dimension_semantics<parallel>, #tpu.dimension_semantics<arbitrary>], iteration_bounds = array<i64: 1, 1>, scalar_prefetch = 0 : i64, scratch_operands = 1 : i64, tpu.core_type = #tpu.core_type<tc>, window_params = [{transform_indices = @transform_0, window_bounds = array<i64: 16, 16>}, {transform_indices = @transform_1, window_bounds = array<i64: 16, 16>}, {transform_indices = @transform_2, window_bounds = array<i64: 16, 9>}, {transform_indices = @transform_3, window_bounds = array<i64: 16, 128>}, {pipeline_mode = #tpu.pipeline_mode<synchronous>, transform_indices = @transform_4, window_bounds = array<i64: 16, 128>}, {pipeline_mode = #tpu.pipeline_mode<synchronous>, transform_indices = @transform_5, window_bounds = array<i64: 1, 8>}, {pipeline_mode = #tpu.pipeline_mode<synchronous>, transform_indices = @transform_6, window_bounds = array<i64: 8, 128>}, {transform_indices = @transform_7, window_bounds = array<i64: 16, 128>}]} {
    %c0_i32 = arith.constant 0 : i32
    %0 = arith.cmpi eq, %arg1, %c0_i32 : i32
    %1 = arith.extui %0 : i1 to i32
    %c0_i32_0 = arith.constant 0 : i32
    %2 = arith.cmpi ne, %1, %c0_i32_0 : i32
    scf.if %2 {
      %cst_10 = arith.constant 0.000000e+00 : f32
      %12 = vector.broadcast %cst_10 : f32 to vector<16x9xf32>
      %c0_11 = arith.constant 0 : index
      %c0_12 = arith.constant 0 : index
      %13 = vector.load %arg10[%c0_11, %c0_12] : memref<16x9xf32, #tpu.memory_space<vmem>>, vector<16x9xf32>
      tpu.vector_store %arg10[%c0_11, %c0_12], %12 {strides = array<i32>} : memref<16x9xf32, #tpu.memory_space<vmem>>, vector<16x9xf32>,
    } else {
    }
    %c0 = arith.constant 0 : index
    %c0_1 = arith.constant 0 : index
    %3 = vector.load %arg10[%c0, %c0_1] : memref<16x9xf32, #tpu.memory_space<vmem>>, vector<16x9xf32>
    %c0_2 = arith.constant 0 : index
    %c0_3 = arith.constant 0 : index
    %4 = vector.load %arg3[%c0_2, %c0_3] : memref<16x16xbf16, #tpu.memory_space<vmem>>, vector<16x16xbf16>
    %c0_4 = arith.constant 0 : index
    %c0_5 = arith.constant 0 : index
    %5 = vector.load %arg4[%c0_4, %c0_5] : memref<16x9xbf16, #tpu.memory_space<vmem>>, vector<16x9xbf16>
    %cst = arith.constant dense<0.000000e+00> : vector<16x9xf32>
    %6 = tpu.matmul %4, %5, %cst {dimension_numbers = #tpu.dot_dimension_numbers<[1], [0], [0], [1], [0, 0, 1, 1], [], []>} : vector<16x16xbf16>, vector<16x9xbf16>, vector<16x9xf32> -> vector<16x9xf32>
    %7 = arith.addf %3, %6 : vector<16x9xf32>
    %c0_6 = arith.constant 0 : index
    %c0_7 = arith.constant 0 : index
    %8 = vector.load %arg10[%c0_6, %c0_7] : memref<16x9xf32, #tpu.memory_space<vmem>>, vector<16x9xf32>
    tpu.vector_store %arg10[%c0_6, %c0_7], %7 {strides = array<i32>} : memref<16x9xf32, #tpu.memory_space<vmem>>, vector<16x9xf32>,
    %c0_i32_8 = arith.constant 0 : i32
    %9 = arith.cmpi eq, %arg1, %c0_i32_8 : i32
    %10 = arith.extui %9 : i1 to i32
    %c0_i32_9 = arith.constant 0 : i32
    %11 = arith.cmpi ne, %10, %c0_i32_9 : i32
    scf.if %11 {
      %c0_10 = arith.constant 0 : index
      %c0_11 = arith.constant 0 : index
      %12 = vector.load %arg10[%c0_10, %c0_11] : memref<16x9xf32, #tpu.memory_space<vmem>>, vector<16x9xf32>
      %13 = vector.extract_strided_slice %12 {offsets = [0, 8], sizes = [16, 1], strides = [1, 1]} : vector<16x9xf32> to vector<16x1xf32>
      %cst_12 = arith.constant 1.000000e+00 : f32
      %14 = vector.broadcast %cst_12 : f32 to vector<16x1xf32>
      %15 = arith.maximumf %13, %14 : vector<16x1xf32>
      %16 = tpu.reciprocal %15 {approx = true} : vector<16x1xf32> -> vector<16x1xf32>
      %17 = vector.extract_strided_slice %12 {offsets = [0, 0], sizes = [16, 8], strides = [1, 1]} : vector<16x9xf32> to vector<16x8xf32>
      %18 = vector.broadcast %16 : vector<16x1xf32> to vector<16x8xf32>
      %19 = arith.mulf %17, %18 : vector<16x8xf32>
      %c0_13 = arith.constant 0 : index
      %c0_14 = arith.constant 0 : index
      %20 = vector.load %arg7[%c0_13, %c0_14] : memref<1x8xf32, #tpu.memory_space<vmem>>, vector<1x8xf32>
      %21 = vector.broadcast %20 : vector<1x8xf32> to vector<16x8xf32>
      %22 = arith.addf %19, %21 : vector<16x8xf32>
      %cst_15 = arith.constant 0.000000e+00 : f32
      %23 = vector.broadcast %cst_15 : f32 to vector<16x8xf32>
      %24 = arith.maximumf %22, %23 : vector<16x8xf32>
      %c0_16 = arith.constant 0 : index
      %c0_17 = arith.constant 0 : index
      %25 = vector.load %arg2[%c0_16, %c0_17] : memref<16x16xbf16, #tpu.memory_space<vmem>>, vector<16x16xbf16>
      %c0_18 = arith.constant 0 : index
      %c0_19 = arith.constant 0 : index
      %26 = vector.load %arg6[%c0_18, %c0_19] : memref<16x128xbf16, #tpu.memory_space<vmem>>, vector<16x128xbf16>
      %cst_20 = arith.constant dense<0.000000e+00> : vector<16x128xf32>
      %27 = tpu.matmul %25, %26, %cst_20 {dimension_numbers = #tpu.dot_dimension_numbers<[1], [0], [0], [1], [0, 0, 1, 1], [], []>} : vector<16x16xbf16>, vector<16x128xbf16>, vector<16x128xf32> -> vector<16x128xf32>
      %28 = arith.truncf %24 : vector<16x8xf32> to vector<16x8xbf16>
      %c0_21 = arith.constant 0 : index
      %c0_22 = arith.constant 0 : index
      %29 = vector.load %arg8[%c0_21, %c0_22] : memref<8x128xbf16, #tpu.memory_space<vmem>>, vector<8x128xbf16>
      %cst_23 = arith.constant dense<0.000000e+00> : vector<16x128xf32>
      %30 = tpu.matmul %28, %29, %cst_23 {dimension_numbers = #tpu.dot_dimension_numbers<[1], [0], [0], [1], [0, 0, 1, 1], [], []>} : vector<16x8xbf16>, vector<8x128xbf16>, vector<16x128xf32> -> vector<16x128xf32>
      %31 = arith.addf %27, %30 : vector<16x128xf32>
      %c0_24 = arith.constant 0 : index
      %c0_25 = arith.constant 0 : index
      %32 = vector.load %arg5[%c0_24, %c0_25] : memref<16x128xf32, #tpu.memory_space<vmem>>, vector<16x128xf32>
      %33 = arith.addf %31, %32 : vector<16x128xf32>
      %c0_26 = arith.constant 0 : index
      %c0_27 = arith.constant 0 : index
      %34 = vector.load %arg9[%c0_26, %c0_27] : memref<16x128xf32, #tpu.memory_space<vmem>>, vector<16x128xf32>
      tpu.vector_store %arg9[%c0_26, %c0_27], %33 {strides = array<i32>} : memref<16x128xf32, #tpu.memory_space<vmem>>, vector<16x128xf32>,
    } else {
    }
    return
  }
  func.func @transform_0(%arg0: i32, %arg1: i32) -> (i32, i32) {
    %c0_i32 = arith.constant 0 : i32
    %c0_i32_0 = arith.constant 0 : i32
    return %arg0, %c0_i32 : i32, i32
  }
  func.func @transform_1(%arg0: i32, %arg1: i32) -> (i32, i32) {
    %c0_i32 = arith.constant 0 : i32
    return %arg0, %arg1 : i32, i32
  }
  func.func @transform_2(%arg0: i32, %arg1: i32) -> (i32, i32) {
    %c0_i32 = arith.constant 0 : i32
    %c0_i32_0 = arith.constant 0 : i32
    return %arg1, %c0_i32 : i32, i32
  }
  func.func @transform_3(%arg0: i32, %arg1: i32) -> (i32, i32) {
    %c0_i32 = arith.constant 0 : i32
    %c0_i32_0 = arith.constant 0 : i32
    return %arg0, %c0_i32 : i32, i32
  }
  func.func @transform_4(%arg0: i32, %arg1: i32) -> (i32, i32) {
    %c0_i32 = arith.constant 0 : i32
    %c0_i32_0 = arith.constant 0 : i32
    %c0_i32_1 = arith.constant 0 : i32
    return %c0_i32, %c0_i32_0 : i32, i32
  }
  func.func @transform_5(%arg0: i32, %arg1: i32) -> (i32, i32) {
    %c0_i32 = arith.constant 0 : i32
    %c0_i32_0 = arith.constant 0 : i32
    %c0_i32_1 = arith.constant 0 : i32
    return %c0_i32, %c0_i32_0 : i32, i32
  }
  func.func @transform_6(%arg0: i32, %arg1: i32) -> (i32, i32) {
    %c0_i32 = arith.constant 0 : i32
    %c0_i32_0 = arith.constant 0 : i32
    %c0_i32_1 = arith.constant 0 : i32
    return %c0_i32, %c0_i32_0 : i32, i32
  }
  func.func @transform_7(%arg0: i32, %arg1: i32) -> (i32, i32) {
    %c0_i32 = arith.constant 0 : i32
    %c0_i32_0 = arith.constant 0 : i32
    return %arg0, %c0_i32 : i32, i32
  }
}

</mosaic_0001>

<llo_original>
// kernel: multi_element_tokenizer.1
$region0: #{multi_element_tokenizer.1}
  #allocation0 [shape = 'u32[]', space=smem, size = 0x4, offset = 0x4, fixed_abs, tag = 'smem constant byte address 0x4 - core index']
  #allocation1 [shape = 'u32[144,128]{1,0:T(1,128)}', space=vmem, size = 0x12000, scoped, tag = 'internal scratch']
  #allocation2 [shape = 'f32[16,9]{1,0:T(8,128)}', space=vmem, size = 0x2000, scoped, tag = 'scratch operand']
  %s0 = inlined_call_operand.vmem [shape: bf16[16,16], index: 0, kind: input, shape index: {}]
  %s1 = inlined_call_operand.vmem [shape: bf16[16,16], index: 1, kind: input, shape index: {}]
  %s2 = inlined_call_operand.vmem [shape: bf16[16,9], index: 2, kind: input, shape index: {}]
  %s3 = inlined_call_operand.vmem [shape: f32[16,128], index: 3, kind: input, shape index: {}]
  %s4 = inlined_call_operand.vmem [shape: bf16[16,128], index: 4, kind: input, shape index: {}]
  %s5 = inlined_call_operand.vmem [shape: f32[1,8], index: 5, kind: input, shape index: {}]
  %s6 = inlined_call_operand.vmem [shape: bf16[8,128], index: 6, kind: input, shape index: {}]
  %s7 = inlined_call_operand.hbm [shape: f32[16,128], index: 7, kind: output, shape index: {}]
  %s8 = sld [smem:[#allocation0]]
  $region46: #{multi_element_tokenizer.1} parent=0
    _
  %s10 = ssub.s32 1, %s8
  %s11 = scalar_select 0, %s10, %s8
  $region1: #{multi_element_tokenizer.1} parent=0
    #allocation3 [shape = 'u8[8192]{0}', space=vmem, size = 0x2000, scoped, tag = 'output window, operand 0, single buffered']
    #allocation4 [shape = 's32[1]{0}', space=sflag, size = 0x4, scoped, tag = 'scoped memory for multi_element_tokenizer.1']
    %12 = vsyncpa [#allocation4], 0
    // Predicated region
    $region2: #{multi_element_tokenizer.1} parent=1 // pred_check
      _
    $region3: #{multi_element_tokenizer.1} parent=1 // pred_check_branch
      %14 = sbr.rel (0) target = $region5
    $region4: #{multi_element_tokenizer.1} parent=1 // pred_region
      _
    $region5: #{multi_element_tokenizer.1} parent=1 // pred_fallthru
      _
    // Predicated region
    $region6: #{multi_element_tokenizer.1} parent=1 // pred_check
      _
    $region7: #{multi_element_tokenizer.1} parent=1 // pred_check_branch
      %16 = sbr.rel (0) target = $region9
    $region8: #{multi_element_tokenizer.1} parent=1 // pred_region
      _
    $region9: #{multi_element_tokenizer.1} parent=1 // pred_fallthru
      _
    // Predicated region
    $region10: #{multi_element_tokenizer.1} parent=1 // pred_check
      _
    $region11: #{multi_element_tokenizer.1} parent=1 // pred_check_branch
      %18 = sbr.rel (0) target = $region13
    $region12: #{multi_element_tokenizer.1} parent=1 // pred_region
      _
    $region13: #{multi_element_tokenizer.1} parent=1 // pred_fallthru
      _
    // Predicated region
    $region14: #{multi_element_tokenizer.1} parent=1 // pred_check
      _
    $region15: #{multi_element_tokenizer.1} parent=1 // pred_check_branch
      %20 = sbr.rel (0) target = $region17
    $region16: #{multi_element_tokenizer.1} parent=1 // pred_region
      _
    $region17: #{multi_element_tokenizer.1} parent=1 // pred_fallthru
      _
    // Predicated region
    $region18: #{multi_element_tokenizer.1} parent=1 // pred_check
      _
    $region19: #{multi_element_tokenizer.1} parent=1 // pred_check_branch
      %22 = sbr.rel (0) target = $region21
    $region20: #{multi_element_tokenizer.1} parent=1 // pred_region
      _
    $region21: #{multi_element_tokenizer.1} parent=1 // pred_fallthru
      _
    // Predicated region
    $region22: #{multi_element_tokenizer.1} parent=1 // pred_check
      _
    $region23: #{multi_element_tokenizer.1} parent=1 // pred_check_branch
      %24 = sbr.rel (0) target = $region25
    $region24: #{multi_element_tokenizer.1} parent=1 // pred_region
      _
    $region25: #{multi_element_tokenizer.1} parent=1 // pred_fallthru
      _
    // Predicated region
    $region26: #{multi_element_tokenizer.1} parent=1 // pred_check
      _
    $region27: #{multi_element_tokenizer.1} parent=1 // pred_check_branch
      %26 = sbr.rel (0) target = $region29
    $region28: #{multi_element_tokenizer.1} parent=1 // pred_region
      _
    $region29: #{multi_element_tokenizer.1} parent=1 // pred_fallthru
      _
    %p28 = scmp.eq.s32.totalorder 0, 0
    // Predicated region
    $region30: #{multi_element_tokenizer.1} parent=1 // pred_check
      %p29 = pneg %p28
    $region31: #{multi_element_tokenizer.1} parent=1 // pred_check_branch
      %31 = sbr.rel (%p29) target = $region33
    $region32: #{multi_element_tokenizer.1} parent=1 // pred_region
      %vm32 = vcmask 72704
      %33 = vst.msk [vmem:[#allocation2] sm:$0xff] %vm32, 0.0
      %34 = vst.msk [vmem:[#allocation2 + $0x8] sm:$0xff] %vm32, 0.0
    $region33: #{multi_element_tokenizer.1} parent=1 // pred_fallthru
      _
    %v35 = vld [vmem:[#allocation2] sm:$0xff]
    %v36 = vld [vmem:[#allocation2 + $0x8] sm:$0xff]
    %v37 = vld [vmem:[%s1] sm:$0xf]
    %v38 = vld [vmem:[%s1 + $0x4] sm:$0xf]
    %v39 = vld [vmem:[%s2] sm:$0xf]
    %v40 = vld [vmem:[%s2 + $0x4] sm:$0xf]
    %v43 = vunpack.c.l.b16 %v37
    %v44 = vunpack.c.l.b16 %v38
    %v45 = vpack.c.b16 %v44, %v43
    %v48 = vunpack.c.l.b16 %v39
    %v49 = vunpack.c.l.b16 %v40
    %v50 = vpack.c.b16 %v49, %v48
    %vm52 = vcmask 130048
    %v54 = vsel %vm52, %v45, 0
    %56 = vmatprep.subr.bf16.mxu0 0
    %57 = vmatpush1.bf16.msra.mxu0 0
    %58 = vmatprep.subr.bf16.mxu0 0
    %59 = vmatpush1.bf16.msra.mxu0 0
    %60 = vmatprep.subr.bf16.mxu0 0
    %61 = vmatpush1.bf16.msra.mxu0 0
    %62 = vmatprep.subr.bf16.mxu0 0
    %63 = vmatpush1.bf16.msra.mxu0 0
    %64 = vmatprep.subr.bf16.mxu0 0
    %65 = vmatpush1.bf16.msra.mxu0 0
    %66 = vmatprep.subr.bf16.mxu0 0
    %67 = vmatpush1.bf16.msra.mxu0 0
    %68 = vmatprep.subr.bf16.mxu0 0
    %69 = vmatpush1.bf16.msra.mxu0 0
    %70 = vmatprep.subr.bf16.mxu0 0
    %71 = vmatpush1.bf16.msra.mxu0 %v50
    %72 = vmatprep.subr.bf16.mxu0 0
    %73 = vmatpush2.bf16.msra.mxu0 0
    %74 = vmatprep.subr.bf16.mxu0 0
    %75 = vmatpush2.bf16.msra.mxu0 0
    %76 = vmatprep.subr.bf16.mxu0 0
    %77 = vmatpush2.bf16.msra.mxu0 0
    %78 = vmatprep.subr.bf16.mxu0 0
    %79 = vmatpush2.bf16.msra.mxu0 0
    %80 = vmatprep.subr.bf16.mxu0 0
    %81 = vmatpush2.bf16.msra.mxu0 0
    %82 = vmatprep.subr.bf16.mxu0 0
    %83 = vmatpush2.bf16.msra.mxu0 0
    %84 = vmatprep.subr.bf16.mxu0 0
    %85 = vmatpush2.bf16.msra.mxu0 0
    %86 = vmatprep.subr.bf16.mxu0 0
    %87 = vmatpush2.bf16.msra.mxu0 0
    %88 = vmatprep.mubr.bf16.mxu0 0
    %89 = vmatmul.mubr.bf16.gmra.mxu0 %v54
    %v90 = vpop.f32.mrf.mxu0
    %v91 = vadd.f32 0.0, %v90
    %v92 = vpop.f32.mrf.mxu0
    %v93 = vpop.f32.mrf.mxu0
    %v94 = vadd.f32 0.0, %v93
    %v95 = vpop.f32.mrf.mxu0
    %96 = vdwg.mxu0
    %v97 = vadd.f32 %v35, %v91
    %v98 = vadd.f32 %v36, %v94
    %vm99 = vcmask 72704
    %100 = vst.msk [vmem:[#allocation2] sm:$0xff] %vm99, %v97
    %101 = vst.msk [vmem:[#allocation2 + $0x8] sm:$0xff] %vm99, %v98
    // Predicated region
    $region34: #{multi_element_tokenizer.1} parent=1 // pred_check
      %p102 = pneg %p28
    $region35: #{multi_element_tokenizer.1} parent=1 // pred_check_branch
      %104 = sbr.rel (%p102) target = $region37
    $region36: #{multi_element_tokenizer.1} parent=1 // pred_region
      %v105 = vld [vmem:[#allocation2] sm:$0xff]
      %v106 = vld [vmem:[#allocation2 + $0x8] sm:$0xff]
      %v107 = vmax.f32 %v105, 1.0
      %v108 = vmax.f32 %v106, 1.0
      %v109 = vrcp.pop %v107
      %v110 = vrcp.pop %v108
      %112 = vset.pattern.permute.xlu0 8
      %113 = vperm.xlu0 %112, %v109
      %v114 = vpop.permute.xlu0 %113
      %117 = vset.pattern.permute.xlu0 8
      %118 = vperm.xlu0 %117, %v110
      %v119 = vpop.permute.xlu0 %118
      %v121 = vmul.f32 %v105, %v114
      %v122 = vmul.f32 %v106, %v119
      %v123 = vld [vmem:[%s5] sm:$0x1]
      %v125 = vlaneseq
      %v126 = vshrl.u32 %v125, 7
      %v127 = vsub.s32 0, %v126
      %v128 = vrot.slane %v123, %v127
      %v130 = vadd.f32 %v121, %v128
      %v131 = vadd.f32 %v122, %v128
      %v132 = vmax.f32 %v130, 0.0
      %v133 = vmax.f32 %v131, 0.0
      %v134 = vld [vmem:[%s0] sm:$0xf]
      %v135 = vld [vmem:[%s0 + $0x4] sm:$0xf]
      %v136 = vld [vmem:[%s4] sm:$0xf]
      %v137 = vld [vmem:[%s4 + $0x4] sm:$0xf]
      %v138 = vpack.c.bf16 %v133, %v132
      %v139 = vld [vmem:[%s6] sm:$0xf]
      %vm140 = vcmask 64512
      %v142 = vsel %vm140, %v138, 0
      %vm144 = vcmask 1043456
      %v146 = vsel %vm144, %v139, 0
      %148 = vmatprep.subr.bf16.mxu0 0
      %149 = vmatpush1.bf16.msra.mxu0 0
      %150 = vmatprep.subr.bf16.mxu0 0
      %151 = vmatpush1.bf16.msra.mxu0 0
      %152 = vmatprep.subr.bf16.mxu0 0
      %153 = vmatpush1.bf16.msra.mxu0 0
      %154 = vmatprep.subr.bf16.mxu0 0
      %155 = vmatpush1.bf16.msra.mxu0 0
      %156 = vmatprep.subr.bf16.mxu0 0
      %157 = vmatpush1.bf16.msra.mxu0 0
      %158 = vmatprep.subr.bf16.mxu0 0
      %159 = vmatpush1.bf16.msra.mxu0 0
      %160 = vmatprep.subr.bf16.mxu0 0
      %161 = vmatpush1.bf16.msra.mxu0 0
      %162 = vmatprep.subr.bf16.mxu0 0
      %163 = vmatpush1.bf16.msra.mxu0 %v146
      %164 = vmatprep.subr.bf16.mxu0 0
      %165 = vmatpush2.bf16.msra.mxu0 0
      %166 = vmatprep.subr.bf16.mxu0 0
      %167 = vmatpush2.bf16.msra.mxu0 0
      %168 = vmatprep.subr.bf16.mxu0 0
      %169 = vmatpush2.bf16.msra.mxu0 0
      %170 = vmatprep.subr.bf16.mxu0 0
      %171 = vmatpush2.bf16.msra.mxu0 0
      %172 = vmatprep.subr.bf16.mxu0 0
      %173 = vmatpush2.bf16.msra.mxu0 0
      %174 = vmatprep.subr.bf16.mxu0 0
      %175 = vmatpush2.bf16.msra.mxu0 0
      %176 = vmatprep.subr.bf16.mxu0 0
      %177 = vmatpush2.bf16.msra.mxu0 0
      %178 = vmatprep.subr.bf16.mxu0 0
      %179 = vmatpush2.bf16.msra.mxu0 0
      %180 = vmatprep.mubr.bf16.mxu0 0
      %181 = vmatmul.mubr.bf16.gmra.mxu0 %v142
      %v182 = vpop.f32.mrf.mxu0
      %v183 = vadd.f32 0.0, %v182
      %v184 = vpop.f32.mrf.mxu0
      %v185 = vpop.f32.mrf.mxu0
      %v186 = vadd.f32 0.0, %v185
      %v187 = vpop.f32.mrf.mxu0
      %188 = vdwg.mxu0
      %v191 = vunpack.c.l.b16 %v134
      %v192 = vunpack.c.l.b16 %v135
      %v193 = vpack.c.b16 %v192, %v191
      %v196 = vunpack.c.l.b16 %v136
      %v197 = vunpack.c.l.b16 %v137
      %v198 = vpack.c.b16 %v197, %v196
      %v201 = vsel %vm52, %v193, 0
      %203 = vmatprep.subr.bf16.mxu0 0
      %204 = vmatpush1.bf16.msra.mxu0 0
      %205 = vmatprep.subr.bf16.mxu0 0
      %206 = vmatpush1.bf16.msra.mxu0 0
      %207 = vmatprep.subr.bf16.mxu0 0
      %208 = vmatpush1.bf16.msra.mxu0 0
      %209 = vmatprep.subr.bf16.mxu0 0
      %210 = vmatpush1.bf16.msra.mxu0 0
      %211 = vmatprep.subr.bf16.mxu0 0
      %212 = vmatpush1.bf16.msra.mxu0 0
      %213 = vmatprep.subr.bf16.mxu0 0
      %214 = vmatpush1.bf16.msra.mxu0 0
      %215 = vmatprep.subr.bf16.mxu0 0
      %216 = vmatpush1.bf16.msra.mxu0 0
      %217 = vmatprep.subr.bf16.mxu0 0
      %218 = vmatpush1.bf16.msra.mxu0 %v198
      %219 = vmatprep.subr.bf16.mxu0 0
      %220 = vmatpush2.bf16.msra.mxu0 0
      %221 = vmatprep.subr.bf16.mxu0 0
      %222 = vmatpush2.bf16.msra.mxu0 0
      %223 = vmatprep.subr.bf16.mxu0 0
      %224 = vmatpush2.bf16.msra.mxu0 0
      %225 = vmatprep.subr.bf16.mxu0 0
      %226 = vmatpush2.bf16.msra.mxu0 0
      %227 = vmatprep.subr.bf16.mxu0 0
      %228 = vmatpush2.bf16.msra.mxu0 0
      %229 = vmatprep.subr.bf16.mxu0 0
      %230 = vmatpush2.bf16.msra.mxu0 0
      %231 = vmatprep.subr.bf16.mxu0 0
      %232 = vmatpush2.bf16.msra.mxu0 0
      %233 = vmatprep.subr.bf16.mxu0 0
      %234 = vmatpush2.bf16.msra.mxu0 0
      %235 = vmatprep.mubr.bf16.mxu0 0
      %236 = vmatmul.mubr.bf16.gmra.mxu0 %v201
      %v237 = vpop.f32.mrf.mxu0
      %v238 = vadd.f32 %v183, %v237
      %v239 = vpop.f32.mrf.mxu0
      %v240 = vpop.f32.mrf.mxu0
      %v241 = vadd.f32 %v186, %v240
      %v242 = vpop.f32.mrf.mxu0
      %243 = vdwg.mxu0
      %v244 = vld [vmem:[%s3] sm:$0xff]
      %v245 = vld [vmem:[%s3 + $0x8] sm:$0xff]
      %v246 = vadd.f32 %v238, %v244
      %v247 = vadd.f32 %v241, %v245
      %248 = vst [vmem:[#allocation3] sm:$0xff] %v246
      %249 = vst [vmem:[#allocation3 + $0x8] sm:$0xff] %v247
    $region37: #{multi_element_tokenizer.1} parent=1 // pred_fallthru
      _
    // Predicated region
    $region38: #{multi_element_tokenizer.1} parent=1 // pred_check
      _
    $region39: #{multi_element_tokenizer.1} parent=1 // pred_check_branch
      %251 = sbr.rel (0) target = $region41
    $region40: #{multi_element_tokenizer.1} parent=1 // pred_region
      %s253 = ssub.s32 256, 256
      %254 = vsyncadd [#allocation4], %s253
      %s255 = sshll.u32 [#allocation3], 4
      %s256 = int_to_ptr.vmem [resolvable:$true] %s255
      %261 = dma.vmem_to_hbm [thread:$0]  %s256, 256, %s7, [#allocation4], 128, 128, 8
    $region41: #{multi_element_tokenizer.1} parent=1 // pred_fallthru
      _
    // Predicated region
    $region42: #{multi_element_tokenizer.1} parent=1 // pred_check
      _
    $region43: #{multi_element_tokenizer.1} parent=1 // pred_check_branch
      %263 = sbr.rel (0) target = $region45
    $region44: #{multi_element_tokenizer.1} parent=1 // pred_region
      %264 = dma.done [#allocation4], 256
    $region45: #{multi_element_tokenizer.1} parent=1 // pred_fallthru
      _
    %265 = vsyncpa [#allocation4], 1

</llo_original>
